<compile_context>
chip_gen: v5e
topology: v5e:2x2
jax: 0.10.0
libtpu: 0.0.40
codegen_flags: <defaults>
</compile_context>

<pallas_src>
import jax
import jax.numpy as jnp
from jax.experimental import pallas as pl
from jax.experimental.pallas import tpu as pltpu


_MAX_TILE_ROWS = 512  # rows (of 128 lanes) per grid step


def _cdiv(a, b):
    return -(-a // b)


def _round_up(x, m):
    return ((x + m - 1) // m) * m


def _yolo_loss_kernel(pred_ref, tgt_ref, out_ref):
    """One grid step over a (3, TILE_R, 128) channel-major slab.

    pred_ref / tgt_ref blocks: (3, TILE_R, 128), channel 0 = conf/objectness,
        channel 1 = x, channel 2 = y.
    out_ref block: (1, 8, 128); sublanes 0..3 hold per-lane partial sums of
        (box SSE, object SSE, no-object SSE, obj count); sublanes 4..7 are 0.
    """
    pc = pred_ref[0].astype(jnp.float32)
    px = pred_ref[1].astype(jnp.float32)
    py = pred_ref[2].astype(jnp.float32)
    obj = tgt_ref[0].astype(jnp.float32)
    tx = tgt_ref[1].astype(jnp.float32)
    ty = tgt_ref[2].astype(jnp.float32)

    dx = px * obj - tx            # pred_xy * obj_exists - true_xy
    dy = py * obj - ty
    d_obj = obj * (pc - 1.0)      # pred_conf * obj_exists - obj_exists
    d_noobj = pc * (1.0 - obj)    # pred_conf * (1 - obj_exists)

    # Sublane-axis (VPU) partial reductions; keep all 128 lanes dense.
    box_p = jnp.sum(dx * dx + dy * dy, axis=0, keepdims=True)   # (1, 128)
    obj_p = jnp.sum(d_obj * d_obj, axis=0, keepdims=True)
    noobj_p = jnp.sum(d_noobj * d_noobj, axis=0, keepdims=True)
    cnt_p = jnp.sum(obj, axis=0, keepdims=True)

    sub = jax.lax.broadcasted_iota(jnp.int32, (8, 128), 0)
    tile = (jnp.where(sub == 0, box_p, 0.0)
            + jnp.where(sub == 1, obj_p, 0.0)
            + jnp.where(sub == 2, noobj_p, 0.0)
            + jnp.where(sub == 3, cnt_p, 0.0))
    out_ref[0] = tile             # full (8, 128) unmasked-lane store


def _repack_lane_dense(x_n3, rows_padded):
    """(N, 3) channels-last -> (3, rows_padded, 128) channel-major, zero-padded."""
    n = x_n3.shape[0]
    x_t = jnp.transpose(x_n3)                      # (3, N)
    pad = rows_padded * 128 - n
    if pad:
        x_t = jnp.pad(x_t, ((0, 0), (0, pad)))
    return x_t.reshape(3, rows_padded, 128)


def _reduction_sums(pred_packed, tgt_packed, tile_r, num_blocks):
    """Returns (box_sse, obj_sse, noobj_sse, obj_sum) as f32 scalars."""
    out = pl.pallas_call(
        _yolo_loss_kernel,
        out_shape=jax.ShapeDtypeStruct((num_blocks, 8, 128), jnp.float32),
        grid_spec=pltpu.PrefetchScalarGridSpec(
            num_scalar_prefetch=0,
            grid=(num_blocks,),
            in_specs=[
                pl.BlockSpec((3, tile_r, 128), lambda i: (0, i, 0)),
                pl.BlockSpec((3, tile_r, 128), lambda i: (0, i, 0)),
            ],
            out_specs=pl.BlockSpec((1, 8, 128), lambda i: (i, 0, 0)),
        ),
        compiler_params=pltpu.CompilerParams(
            # Per-block partials are independent -> shard across TCs (v7x).
            dimension_semantics=("parallel",),
        ),
    )(pred_packed, tgt_packed)
    sums = jnp.sum(out, axis=(0, 2))               # (8,), tiny final reduce
    return sums[0], sums[1], sums[2], sums[3]


class YOLOAXTrackLossPallas:
    """JAX/Pallas re-implementation of YOLO_AXTrack_loss.forward."""

    def __init__(self, Sy, Sx, lambda_obj, lambda_noobj, lambda_coord_anchor):
        self.Sy = Sy
        self.Sx = Sx
        self.lambda_obj = lambda_obj
        self.lambda_noobj = lambda_noobj
        self.lambda_coord_anchor = lambda_coord_anchor

    def __call__(self, predictions, target):
        bs = target.shape[0]
        predictions = predictions.reshape(bs, self.Sy, self.Sx, 3)
        target = target.reshape(bs, self.Sy, self.Sx, 3)
        n = bs * self.Sy * self.Sx

        rows = _cdiv(n, 128)
        tile_r = min(_MAX_TILE_ROWS, _round_up(rows, 8))
        num_blocks = _cdiv(rows, tile_r)
        rows_padded = num_blocks * tile_r

        # Keep native dtype (e.g. bf16) through the repack; the kernel casts to
        # f32 on load and accumulates in f32.
        pred_packed = _repack_lane_dense(predictions.reshape(-1, 3), rows_padded)
        tgt_packed = _repack_lane_dense(target.reshape(-1, 3), rows_padded)

        box_sse, obj_sse, noobj_sse, obj_sum = _reduction_sums(
            pred_packed, tgt_packed, tile_r, num_blocks)

        total_pos_labels_rate = obj_sum / (bs * self.Sx * self.Sy)
        loss_components = {
            "total_no_object_loss": self.lambda_noobj * noobj_sse / bs,
            "total_object_loss": self.lambda_obj * obj_sse / bs,
            "total_xy_anchors_loss": self.lambda_coord_anchor * box_sse / bs,
        }
        loss = (
            loss_components["total_no_object_loss"]
            + loss_components["total_object_loss"]
            + loss_components["total_xy_anchors_loss"]
        )
        loss_components["total_summed_loss"] = loss
        loss_components["total_pos_labels_rate"] = total_pos_labels_rate
        # TODO(synk): pandas.Series conversion of loss_components is host-side
        # bookkeeping; returned here as a plain dict of jnp scalars instead.
        return loss, loss_components


def _reference_loss(predictions, target, Sy, Sx, l_obj, l_noobj, l_coord):
    """Pure-JAX reference (mirrors the PyTorch forward) for validation."""
    bs = target.shape[0]
    predictions = predictions.reshape(bs, Sy, Sx, 3).astype(jnp.float32)
    target = target.reshape(bs, Sy, Sx, 3).astype(jnp.float32)
    obj = target[..., 0:1]
    true_xy = target[..., 1:3]
    noobj = 1.0 - obj
    pconf = predictions[..., 0:1]
    pxy = predictions[..., 1:3]
    box = jnp.sum((pxy * obj - true_xy) ** 2)
    objl = jnp.sum((pconf * obj - obj) ** 2)
    noobjl = jnp.sum((pconf * noobj) ** 2)
    loss = (l_noobj * noobjl + l_obj * objl + l_coord * box) / bs
    return loss


if __name__ == "__main__":
    # Small shapes consistent with the module: bs=2, Sy=12, Sx=12, 3 channels.
    bs, Sy, Sx = 2, 12, 12
    lambda_obj, lambda_noobj, lambda_coord = 1.0, 0.5, 5.0

    key = jax.random.PRNGKey(0)
    kp, kt_obj, kt_xy = jax.random.split(key, 3)

    # Predictions arrive "raw" (any shape with bs*Sy*Sx*3 elements), as in torch.
    predictions = jax.random.normal(kp, (bs, Sy * Sx * 3), dtype=jnp.float32)

    # Target: channel 0 is a binary objectness label, channels 1:2 are xy coords.
    obj_labels = (jax.random.uniform(kt_obj, (bs, Sy, Sx, 1)) < 0.15).astype(jnp.float32)
    xy_labels = jax.random.uniform(kt_xy, (bs, Sy, Sx, 2), dtype=jnp.float32) * obj_labels
    target = jnp.concatenate([obj_labels, xy_labels], axis=-1)

    loss_mod = YOLOAXTrackLossPallas(Sy, Sx, lambda_obj, lambda_noobj, lambda_coord)
    loss, comps = loss_mod(predictions, target)
    loss = jax.block_until_ready(loss)

    ref = _reference_loss(predictions, target, Sy, Sx,
                          lambda_obj, lambda_noobj, lambda_coord)
    ref = jax.block_until_ready(ref)

    assert jnp.allclose(loss, ref, rtol=1e-5, atol=1e-5), (loss, ref)
    expected_rate = jnp.sum(target[..., 0]) / (bs * Sx * Sy)
    assert jnp.allclose(comps["total_pos_labels_rate"], expected_rate,
                        rtol=1e-5, atol=1e-6)

    print("KERNEL_OK")
</pallas_src>

<mosaic_0001>
module attributes {stable_mosaic.version = 11 : i64} {
  func.func @_yolo_loss_kernel(%arg0: i32, %arg1: memref<3x8x128xf32, #tpu.memory_space<vmem>>, %arg2: memref<3x8x128xf32, #tpu.memory_space<vmem>>, %arg3: memref<1x8x128xf32, #tpu.memory_space<vmem>>) attributes {dimension_semantics = [#tpu.dimension_semantics<parallel>], iteration_bounds = array<i64: 1>, scalar_prefetch = 0 : i64, scratch_operands = 0 : i64, tpu.core_type = #tpu.core_type<tc>, window_params = [{transform_indices = @transform_0, window_bounds = array<i64: 3, 8, 128>}, {transform_indices = @transform_1, window_bounds = array<i64: 3, 8, 128>}, {transform_indices = @transform_2, window_bounds = array<i64: 1, 8, 128>}]} {
    %c0 = arith.constant 0 : index
    %c0_0 = arith.constant 0 : index
    %c0_1 = arith.constant 0 : index
    %0 = vector.load %arg1[%c0, %c0_0, %c0_1] : memref<3x8x128xf32, #tpu.memory_space<vmem>>, vector<1x8x128xf32>
    %1 = vector.shape_cast %0 : vector<1x8x128xf32> to vector<8x128xf32>
    %c1 = arith.constant 1 : index
    %c0_2 = arith.constant 0 : index
    %c0_3 = arith.constant 0 : index
    %2 = vector.load %arg1[%c1, %c0_2, %c0_3] : memref<3x8x128xf32, #tpu.memory_space<vmem>>, vector<1x8x128xf32>
    %3 = vector.shape_cast %2 : vector<1x8x128xf32> to vector<8x128xf32>
    %c2 = arith.constant 2 : index
    %c0_4 = arith.constant 0 : index
    %c0_5 = arith.constant 0 : index
    %4 = vector.load %arg1[%c2, %c0_4, %c0_5] : memref<3x8x128xf32, #tpu.memory_space<vmem>>, vector<1x8x128xf32>
    %5 = vector.shape_cast %4 : vector<1x8x128xf32> to vector<8x128xf32>
    %c0_6 = arith.constant 0 : index
    %c0_7 = arith.constant 0 : index
    %c0_8 = arith.constant 0 : index
    %6 = vector.load %arg2[%c0_6, %c0_7, %c0_8] : memref<3x8x128xf32, #tpu.memory_space<vmem>>, vector<1x8x128xf32>
    %7 = vector.shape_cast %6 : vector<1x8x128xf32> to vector<8x128xf32>
    %c1_9 = arith.constant 1 : index
    %c0_10 = arith.constant 0 : index
    %c0_11 = arith.constant 0 : index
    %8 = vector.load %arg2[%c1_9, %c0_10, %c0_11] : memref<3x8x128xf32, #tpu.memory_space<vmem>>, vector<1x8x128xf32>
    %9 = vector.shape_cast %8 : vector<1x8x128xf32> to vector<8x128xf32>
    %c2_12 = arith.constant 2 : index
    %c0_13 = arith.constant 0 : index
    %c0_14 = arith.constant 0 : index
    %10 = vector.load %arg2[%c2_12, %c0_13, %c0_14] : memref<3x8x128xf32, #tpu.memory_space<vmem>>, vector<1x8x128xf32>
    %11 = vector.shape_cast %10 : vector<1x8x128xf32> to vector<8x128xf32>
    %12 = arith.mulf %3, %7 : vector<8x128xf32>
    %13 = arith.subf %12, %9 : vector<8x128xf32>
    %14 = arith.mulf %5, %7 : vector<8x128xf32>
    %15 = arith.subf %14, %11 : vector<8x128xf32>
    %cst = arith.constant 1.000000e+00 : f32
    %16 = vector.broadcast %cst : f32 to vector<8x128xf32>
    %17 = arith.subf %1, %16 : vector<8x128xf32>
    %18 = arith.mulf %7, %17 : vector<8x128xf32>
    %cst_15 = arith.constant 1.000000e+00 : f32
    %19 = vector.broadcast %cst_15 : f32 to vector<8x128xf32>
    %20 = arith.subf %19, %7 : vector<8x128xf32>
    %21 = arith.mulf %1, %20 : vector<8x128xf32>
    %22 = arith.mulf %13, %13 : vector<8x128xf32>
    %23 = arith.mulf %15, %15 : vector<8x128xf32>
    %24 = arith.addf %22, %23 : vector<8x128xf32>
    %cst_16 = arith.constant dense<0.000000e+00> : vector<128xf32>
    %25 = vector.multi_reduction <add>, %24, %cst_16 [0] : vector<8x128xf32> to vector<128xf32>
    %26 = vector.shape_cast %25 : vector<128xf32> to vector<1x128xf32>
    %27 = arith.mulf %18, %18 : vector<8x128xf32>
    %cst_17 = arith.constant dense<0.000000e+00> : vector<128xf32>
    %28 = vector.multi_reduction <add>, %27, %cst_17 [0] : vector<8x128xf32> to vector<128xf32>
    %29 = vector.shape_cast %28 : vector<128xf32> to vector<1x128xf32>
    %30 = arith.mulf %21, %21 : vector<8x128xf32>
    %cst_18 = arith.constant dense<0.000000e+00> : vector<128xf32>
    %31 = vector.multi_reduction <add>, %30, %cst_18 [0] : vector<8x128xf32> to vector<128xf32>
    %32 = vector.shape_cast %31 : vector<128xf32> to vector<1x128xf32>
    %cst_19 = arith.constant dense<0.000000e+00> : vector<128xf32>
    %33 = vector.multi_reduction <add>, %7, %cst_19 [0] : vector<8x128xf32> to vector<128xf32>
    %34 = vector.shape_cast %33 : vector<128xf32> to vector<1x128xf32>
    %35 = tpu.iota {dimensions = array<i32: 0>} : vector<8x128xi32>
    %c0_i32 = arith.constant 0 : i32
    %36 = vector.broadcast %c0_i32 : i32 to vector<8x128xi32>
    %37 = arith.cmpi eq, %35, %36 : vector<8x128xi32>
    %cst_20 = arith.constant 0.000000e+00 : f32
    %38 = vector.shape_cast %26 : vector<1x128xf32> to vector<1x128xf32>
    %39 = vector.broadcast %38 : vector<1x128xf32> to vector<8x128xf32>
    %40 = vector.broadcast %cst_20 : f32 to vector<8x128xf32>
    %41 = arith.select %37, %39, %40 : vector<8x128xi1>, vector<8x128xf32>
    %c1_i32 = arith.constant 1 : i32
    %42 = vector.broadcast %c1_i32 : i32 to vector<8x128xi32>
    %43 = arith.cmpi eq, %35, %42 : vector<8x128xi32>
    %cst_21 = arith.constant 0.000000e+00 : f32
    %44 = vector.shape_cast %29 : vector<1x128xf32> to vector<1x128xf32>
    %45 = vector.broadcast %44 : vector<1x128xf32> to vector<8x128xf32>
    %46 = vector.broadcast %cst_21 : f32 to vector<8x128xf32>
    %47 = arith.select %43, %45, %46 : vector<8x128xi1>, vector<8x128xf32>
    %48 = arith.addf %41, %47 : vector<8x128xf32>
    %c2_i32 = arith.constant 2 : i32
    %49 = vector.broadcast %c2_i32 : i32 to vector<8x128xi32>
    %50 = arith.cmpi eq, %35, %49 : vector<8x128xi32>
    %cst_22 = arith.constant 0.000000e+00 : f32
    %51 = vector.shape_cast %32 : vector<1x128xf32> to vector<1x128xf32>
    %52 = vector.broadcast %51 : vector<1x128xf32> to vector<8x128xf32>
    %53 = vector.broadcast %cst_22 : f32 to vector<8x128xf32>
    %54 = arith.select %50, %52, %53 : vector<8x128xi1>, vector<8x128xf32>
    %55 = arith.addf %48, %54 : vector<8x128xf32>
    %c3_i32 = arith.constant 3 : i32
    %56 = vector.broadcast %c3_i32 : i32 to vector<8x128xi32>
    %57 = arith.cmpi eq, %35, %56 : vector<8x128xi32>
    %cst_23 = arith.constant 0.000000e+00 : f32
    %58 = vector.shape_cast %34 : vector<1x128xf32> to vector<1x128xf32>
    %59 = vector.broadcast %58 : vector<1x128xf32> to vector<8x128xf32>
    %60 = vector.broadcast %cst_23 : f32 to vector<8x128xf32>
    %61 = arith.select %57, %59, %60 : vector<8x128xi1>, vector<8x128xf32>
    %62 = arith.addf %55, %61 : vector<8x128xf32>
    %c0_24 = arith.constant 0 : index
    %c0_25 = arith.constant 0 : index
    %c0_26 = arith.constant 0 : index
    %63 = vector.load %arg3[%c0_24, %c0_25, %c0_26] : memref<1x8x128xf32, #tpu.memory_space<vmem>>, vector<1x8x128xf32>
    %64 = vector.shape_cast %63 : vector<1x8x128xf32> to vector<8x128xf32>
    %65 = vector.shape_cast %62 : vector<8x128xf32> to vector<1x8x128xf32>
    tpu.vector_store %arg3[%c0_24, %c0_25, %c0_26], %65 {strides = array<i32>} : memref<1x8x128xf32, #tpu.memory_space<vmem>>, vector<1x8x128xf32>,
    return
  }
  func.func @transform_0(%arg0: i32) -> (i32, i32, i32) {
    %c0_i32 = arith.constant 0 : i32
    %c0_i32_0 = arith.constant 0 : i32
    %c0_i32_1 = arith.constant 0 : i32
    return %c0_i32, %arg0, %c0_i32_0 : i32, i32, i32
  }
  func.func @transform_1(%arg0: i32) -> (i32, i32, i32) {
    %c0_i32 = arith.constant 0 : i32
    %c0_i32_0 = arith.constant 0 : i32
    %c0_i32_1 = arith.constant 0 : i32
    return %c0_i32, %arg0, %c0_i32_0 : i32, i32, i32
  }
  func.func @transform_2(%arg0: i32) -> (i32, i32, i32) {
    %c0_i32 = arith.constant 0 : i32
    %c0_i32_0 = arith.constant 0 : i32
    %c0_i32_1 = arith.constant 0 : i32
    return %arg0, %c0_i32, %c0_i32_0 : i32, i32, i32
  }
}

</mosaic_0001>

<llo_original>
// kernel: tpu_custom_call.1
$region0: #{tpu_custom_call.1}
  #allocation0 [shape = 'u32[]', space=smem, size = 0x4, offset = 0x4, fixed_abs, tag = 'smem constant byte address 0x4 - core index']
  #allocation1 [shape = 'u32[72,128]{1,0:T(1,128)}', space=vmem, size = 0x9000, scoped, tag = 'internal scratch']
  %s0 = inlined_call_operand.hbm [shape: f32[3,8,128], index: 0, kind: input, shape index: {}]
  %s1 = inlined_call_operand.hbm [shape: f32[3,8,128], index: 1, kind: input, shape index: {}]
  %s2 = inlined_call_operand.hbm [shape: f32[1,8,128], index: 2, kind: output, shape index: {}]
  %s3 = sld [smem:[#allocation0]]
  $region26: #{tpu_custom_call.1} parent=0
    _
  %s5 = ssub.s32 1, %s3
  %s6 = scalar_select 0, %s5, %s3
  $region1: #{tpu_custom_call.1} parent=0
    #allocation2 [shape = 'u8[12288]{0}', space=vmem, size = 0x3000, scoped, tag = 'input window, operand 0, single buffered']
    #allocation3 [shape = 's32[1]{0}', space=sflag, size = 0x4, scoped, tag = 'scoped memory for tpu_custom_call.1']
    #allocation4 [shape = 's32[1]{0}', space=sflag, size = 0x4, scoped, tag = 'scoped memory for tpu_custom_call.1']
    #allocation5 [shape = 'u8[12288]{0}', space=vmem, size = 0x3000, scoped, tag = 'input window, operand 1, single buffered']
    #allocation6 [shape = 's32[1]{0}', space=sflag, size = 0x4, scoped, tag = 'scoped memory for tpu_custom_call.1']
    #allocation7 [shape = 'u8[4096]{0}', space=vmem, size = 0x1000, scoped, tag = 'output window, operand 0, single buffered']
    %7 = vsyncpa [#allocation3], 0
    %8 = vsyncpa [#allocation6], 0
    %9 = vsyncpa [#allocation4], 0
    // Predicated region
    $region2: #{tpu_custom_call.1} parent=1 // pred_check
      _
    $region3: #{tpu_custom_call.1} parent=1 // pred_check_branch
      %11 = sbr.rel (0) target = $region5
    $region4: #{tpu_custom_call.1} parent=1 // pred_region
      %13 = vsyncadd [#allocation3], 0
      %s14 = sshll.u32 %s0, 4
      %s15 = int_to_ptr.hbm [resolvable:$true] %s14
      %s16 = sshll.u32 [#allocation2], 4
      %s17 = int_to_ptr.vmem [resolvable:$true] %s16
      %22 = dma.hbm_to_vmem [thread:$0]  %s15, 384, %s17, [#allocation3], 128, 128, 8
    $region5: #{tpu_custom_call.1} parent=1 // pred_fallthru
      _
    // Predicated region
    $region6: #{tpu_custom_call.1} parent=1 // pred_check
      _
    $region7: #{tpu_custom_call.1} parent=1 // pred_check_branch
      %24 = sbr.rel (0) target = $region9
    $region8: #{tpu_custom_call.1} parent=1 // pred_region
      %26 = vsyncadd [#allocation6], 0
      %s27 = sshll.u32 %s1, 4
      %s28 = int_to_ptr.hbm [resolvable:$true] %s27
      %s29 = sshll.u32 [#allocation5], 4
      %s30 = int_to_ptr.vmem [resolvable:$true] %s29
      %35 = dma.hbm_to_vmem [thread:$0]  %s28, 384, %s30, [#allocation6], 128, 128, 8
    $region9: #{tpu_custom_call.1} parent=1 // pred_fallthru
      _
    // Predicated region
    $region10: #{tpu_custom_call.1} parent=1 // pred_check
      _
    $region11: #{tpu_custom_call.1} parent=1 // pred_check_branch
      %37 = sbr.rel (0) target = $region13
    $region12: #{tpu_custom_call.1} parent=1 // pred_region
      %39 = dma.done [#allocation3], 384
    $region13: #{tpu_custom_call.1} parent=1 // pred_fallthru
      _
    // Predicated region
    $region14: #{tpu_custom_call.1} parent=1 // pred_check
      _
    $region15: #{tpu_custom_call.1} parent=1 // pred_check_branch
      %41 = sbr.rel (0) target = $region17
    $region16: #{tpu_custom_call.1} parent=1 // pred_region
      %43 = dma.done [#allocation6], 384
    $region17: #{tpu_custom_call.1} parent=1 // pred_fallthru
      _
    %v44 = vld [vmem:[#allocation2] sm:$0xff]
    %s45 = scalar_lea.vmem [#allocation2], 8
    %v46 = vld [vmem:[%s45] sm:$0xff]
    %s47 = scalar_lea.vmem [#allocation2], 16
    %v48 = vld [vmem:[%s47] sm:$0xff]
    %v49 = vld [vmem:[#allocation5] sm:$0xff]
    %s50 = scalar_lea.vmem [#allocation5], 8
    %v51 = vld [vmem:[%s50] sm:$0xff]
    %s52 = scalar_lea.vmem [#allocation5], 16
    %v53 = vld [vmem:[%s52] sm:$0xff]
    %v54 = vmul.f32 %v46, %v49
    %v55 = vsub.f32 %v54, %v51
    %v56 = vmul.f32 %v48, %v49
    %v57 = vsub.f32 %v56, %v53
    %v58 = vsub.f32 %v44, 1.0
    %v59 = vmul.f32 %v49, %v58
    %v60 = vsub.f32 1.0, %v49
    %v61 = vmul.f32 %v44, %v60
    %v62 = vmul.f32 %v55, %v55
    %v63 = vmul.f32 %v57, %v57
    %v64 = vadd.f32 %v62, %v63
    %v65 = vrot.slane %v64, 4
    %v66 = vadd.f32 %v64, %v65
    %v67 = vrot.slane %v66, 2
    %v68 = vadd.f32 %v66, %v67
    %v69 = vrot.slane %v68, 1
    %v70 = vadd.f32 %v68, %v69
    %v71 = vmul.f32 %v59, %v59
    %v72 = vrot.slane %v71, 4
    %v73 = vadd.f32 %v71, %v72
    %v74 = vrot.slane %v73, 2
    %v75 = vadd.f32 %v73, %v74
    %v76 = vrot.slane %v75, 1
    %v77 = vadd.f32 %v75, %v76
    %v78 = vmul.f32 %v61, %v61
    %v79 = vrot.slane %v78, 4
    %v80 = vadd.f32 %v78, %v79
    %v81 = vrot.slane %v80, 2
    %v82 = vadd.f32 %v80, %v81
    %v83 = vrot.slane %v82, 1
    %v84 = vadd.f32 %v82, %v83
    %v85 = vrot.slane %v49, 4
    %v86 = vadd.f32 %v49, %v85
    %v87 = vrot.slane %v86, 2
    %v88 = vadd.f32 %v86, %v87
    %v89 = vrot.slane %v88, 1
    %v90 = vadd.f32 %v88, %v89
    %v91 = vlaneseq
    %v92 = vshrl.u32 %v91, 7
    %vm93 = vcmp.eq.s32.totalorder %v92, 0
    %v94 = vsel %vm93, %v70, 0.0
    %vm95 = vcmp.eq.s32.totalorder %v92, 1
    %v96 = vsel %vm95, %v77, 0.0
    %v97 = vadd.f32 %v94, %v96
    %vm98 = vcmp.eq.s32.totalorder %v92, 2
    %v99 = vsel %vm98, %v84, 0.0
    %v100 = vadd.f32 %v97, %v99
    %vm101 = vcmp.eq.s32.totalorder %v92, 3
    %v102 = vsel %vm101, %v90, 0.0
    %v103 = vadd.f32 %v100, %v102
    %104 = vst [vmem:[#allocation7] sm:$0xff] %v103
    // Predicated region
    $region18: #{tpu_custom_call.1} parent=1 // pred_check
      _
    $region19: #{tpu_custom_call.1} parent=1 // pred_check_branch
      %106 = sbr.rel (0) target = $region21
    $region20: #{tpu_custom_call.1} parent=1 // pred_region
      %108 = vsyncadd [#allocation4], 0
      %s110 = sshll.u32 [#allocation7], 4
      %s111 = int_to_ptr.vmem [resolvable:$true] %s110
      %s112 = sshll.u32 %s2, 4
      %s113 = int_to_ptr.hbm [resolvable:$true] %s112
      %115 = dma.vmem_to_hbm [thread:$0]  %s111, 128, %s113, [#allocation4]
    $region21: #{tpu_custom_call.1} parent=1 // pred_fallthru
      _
    // Predicated region
    $region22: #{tpu_custom_call.1} parent=1 // pred_check
      _
    $region23: #{tpu_custom_call.1} parent=1 // pred_check_branch
      %117 = sbr.rel (0) target = $region25
    $region24: #{tpu_custom_call.1} parent=1 // pred_region
      %119 = dma.done [#allocation4], 128
    $region25: #{tpu_custom_call.1} parent=1 // pred_fallthru
      _
    %120 = vsyncpa [#allocation3], 1
    %121 = vsyncpa [#allocation6], 1
    %122 = vsyncpa [#allocation4], 1

</llo_original>
